<compile_context>
chip_gen: v6e
topology: v6e:2x2x1
jax: 0.10.0
libtpu: 0.0.40
codegen_flags: <defaults>
</compile_context>

<pallas_src>
from functools import partial

import numpy as np
import jax
import jax.numpy as jnp
from jax.experimental import pallas as pl
from jax.experimental.pallas import tpu as pltpu


def _pick_tile(n, target):
    """Largest tile <= target that divides n and keeps the sublane axis
    8-aligned; falls back to the whole axis (always a legal block)."""
    if n <= target:
        return n
    t = target - (target % 8)
    while t >= 8:
        if n % t == 0:
            return t
        t -= 8
    return n


# ---------------------------------------------------------------------------
# Linear kernel: y = x @ w + b   (w already (in, out); rows tiled)
# ---------------------------------------------------------------------------
def _linear_kernel(x_ref, w_ref, b_ref, o_ref):
    o_ref[...] = (
        jnp.dot(x_ref[...], w_ref[...], preferred_element_type=jnp.float32)
        + b_ref[...]
    ).astype(o_ref.dtype)


def _linear(x2d, w, b, *, tm_target=512):
    n, kin = x2d.shape
    nout = w.shape[1]
    tm = _pick_tile(n, tm_target)
    # NOTE: in/out dims of this module are small, so K is not tiled; add a K
    # grid axis + f32 VMEM accumulator if in/out ever become large.
    return pl.pallas_call(
        _linear_kernel,
        out_shape=jax.ShapeDtypeStruct((n, nout), jnp.float32),
        grid_spec=pltpu.PrefetchScalarGridSpec(
            num_scalar_prefetch=0,
            grid=(n // tm,),
            in_specs=[
                pl.BlockSpec((tm, kin), lambda i: (i, 0)),
                pl.BlockSpec((kin, nout), lambda i: (0, 0)),
                pl.BlockSpec((1, nout), lambda i: (0, 0)),
            ],
            out_specs=pl.BlockSpec((tm, nout), lambda i: (i, 0)),
        ),
        compiler_params=pltpu.CompilerParams(
            dimension_semantics=("parallel",),
            vmem_limit_bytes=32 * 1024 * 1024,
        ),
        cost_estimate=pl.CostEstimate(
            flops=2 * n * kin * nout,
            transcendentals=0,
            bytes_accessed=4 * (n * kin + kin * nout + n * nout),
        ),
    )(x2d, w, b.reshape(1, nout))


# ---------------------------------------------------------------------------
# Attention kernel (grid = (B, Sq/tq, Sk/tk); H whole per block)
# ---------------------------------------------------------------------------
def _attn_kernel(*refs, scale, with_mask):
    if with_mask:
        q_ref, k_ref, v_ref, m_ref, o_ref, acc_ref = refs
    else:
        q_ref, k_ref, v_ref, o_ref, acc_ref = refs
        m_ref = None

    j = pl.program_id(2)  # Sk (reduction) grid axis — innermost

    @pl.when(j == 0)
    def _():
        acc_ref[...] = jnp.zeros_like(acc_ref)

    q = q_ref[0].astype(jnp.float32)  # (H, tq, dk)
    k = k_ref[0].astype(jnp.float32)  # (H, tk, dk)
    v = v_ref[0].astype(jnp.float32)  # (H, tk, dv)
    H = q.shape[0]
    dv = v.shape[2]

    # scores = q @ k^T / sqrt(key_dim); batched over H, lane axis = tk.
    s = jnp.einsum("hqd,hkd->hqk", q, k, preferred_element_type=jnp.float32) * scale
    if m_ref is not None:
        s = s + (-1e9) * m_ref[0][None, :, :]

    # torch F.softmax with implicit dim on a 4-D tensor -> softmax over dim=1,
    # i.e. over HEADS (axis 0 here).  Cheap (elementwise across H, no
    # cross-lane reduce) and independent of Sk, so Sk tiling needs no
    # online-softmax bookkeeping — only the p@v sum is accumulated.
    mx = jnp.max(s, axis=0, keepdims=True)
    e = jnp.exp(s - mx)
    w = e * pl.reciprocal(jnp.sum(e, axis=0, keepdims=True), approx=True)

    acc_ref[...] += jnp.einsum(
        "hqk,hkd->hqd", w, v, preferred_element_type=jnp.float32
    )

    @pl.when(j == pl.num_programs(2) - 1)
    def _():
        # Merge heads into the lane-dense (tq, H*dv) output tile in VMEM.
        # Replaces the old post-kernel transpose(0,2,1,3)+reshape HBM round trip.
        for h in range(H):
            o_ref[0, :, h * dv:(h + 1) * dv] = acc_ref[h].astype(o_ref.dtype)


def _attention(q4, k4, v4, mask, *, key_dim):
    B, H, Sq, dk = q4.shape
    Sk = k4.shape[2]
    dv = v4.shape[3]
    tq = _pick_tile(Sq, 256)
    tk = _pick_tile(Sk, 256)
    scale = float(1.0 / np.sqrt(np.float32(key_dim)))  # full key_dim, per torch code

    with_mask = mask is not None
    inputs = [q4, k4, v4]
    in_specs = [
        pl.BlockSpec((1, H, tq, dk), lambda b, i, j: (b, 0, i, 0)),
        pl.BlockSpec((1, H, tk, dk), lambda b, i, j: (b, 0, j, 0)),
        pl.BlockSpec((1, H, tk, dv), lambda b, i, j: (b, 0, j, 0)),
    ]
    mask_bytes = 0
    if with_mask:
        m = jnp.asarray(mask, jnp.float32)
        if m.ndim == 4:
            # TODO(synk): per-head masks (shape[1] == H > 1) would need a
            # (1, H, tq, tk) mask block; encoder masks broadcast over heads.
            assert m.shape[1] == 1, "per-head masks are not supported"
            m = m[:, 0]
        m = jnp.broadcast_to(m, (B, Sq, Sk))
        inputs.append(m)
        in_specs.append(pl.BlockSpec((1, tq, tk), lambda b, i, j: (b, i, j)))
        mask_bytes = 4 * B * Sq * Sk

    kernel = partial(_attn_kernel, scale=scale, with_mask=with_mask)

    return pl.pallas_call(
        kernel,
        out_shape=jax.ShapeDtypeStruct((B, Sq, H * dv), jnp.float32),
        grid_spec=pltpu.PrefetchScalarGridSpec(
            num_scalar_prefetch=0,
            grid=(B, Sq // tq, Sk // tk),
            in_specs=in_specs,
            out_specs=pl.BlockSpec((1, tq, H * dv), lambda b, i, j: (b, i, 0)),
            scratch_shapes=[pltpu.VMEM((H, tq, dv), jnp.float32)],
        ),
        compiler_params=pltpu.CompilerParams(
            dimension_semantics=("parallel", "parallel", "arbitrary"),
            vmem_limit_bytes=32 * 1024 * 1024,
        ),
        cost_estimate=pl.CostEstimate(
            flops=2 * B * H * Sq * Sk * (dk + dv),
            transcendentals=B * H * Sq * Sk,
            bytes_accessed=4 * B * H * (Sq * dk + Sk * dk + Sk * dv + Sq * dv)
            + mask_bytes,
        ),
    )(*inputs)


# ---------------------------------------------------------------------------
# Module wrapper (layout plumbing in XLA, hot paths in Pallas)
# ---------------------------------------------------------------------------
def multi_head_attention(params, queries, keys, values, mask=None):
    B, Sq, Fin = queries.shape
    Sk = keys.shape[1]
    H = params["heads"]
    key_dim = params["key_dim"]
    value_dim = params["value_dim"]
    dk = key_dim // H
    dv = value_dim // H
    # reshape_tensor(flag=False) merges heads back to key_dim => value_dim == key_dim
    assert value_dim == key_dim

    if queries is keys and keys is values:
        # Self-attention: one fused QKV matmul (weights pre-concatenated at init).
        qkv = _linear(queries.reshape(B * Sq, Fin), params["W_qkv_w"], params["W_qkv_b"])
        q = qkv[:, :key_dim].reshape(B, Sq, key_dim)
        k = qkv[:, key_dim:2 * key_dim].reshape(B, Sk, key_dim)
        v = qkv[:, 2 * key_dim:].reshape(B, Sk, value_dim)
    else:
        q = _linear(queries.reshape(B * Sq, Fin), params["W_q_w"], params["W_q_b"]).reshape(B, Sq, key_dim)
        k = _linear(keys.reshape(B * Sk, -1), params["W_k_w"], params["W_k_b"]).reshape(B, Sk, key_dim)
        v = _linear(values.reshape(B * Sk, -1), params["W_v_w"], params["W_v_b"]).reshape(B, Sk, value_dim)

    # Head split (reshape_tensor flag=True): (B, S, H, d) -> (B, H, S, d).
    # Done in XLA outside the kernel (layout plumbing, not compute).
    q4 = q.reshape(B, Sq, H, dk).transpose(0, 2, 1, 3)
    k4 = k.reshape(B, Sk, H, dk).transpose(0, 2, 1, 3)
    v4 = v.reshape(B, Sk, H, dv).transpose(0, 2, 1, 3)

    # Attention kernel writes lane-dense (B, Sq, H*dv) == (B, Sq, key_dim)
    # directly (head merge happens inside the kernel epilogue).
    attn = _attention(q4, k4, v4, mask, key_dim=key_dim)

    out = _linear(attn.reshape(B * Sq, key_dim), params["W_o_w"], params["W_o_b"])
    return out.reshape(B, Sq, -1)


# ---------------------------------------------------------------------------
# Pure-JAX reference (for correctness check only)
# ---------------------------------------------------------------------------
def mha_reference(p, q_in, k_in, v_in, mask=None):
    H, key_dim = p["heads"], p["key_dim"]
    B, Sq, _ = q_in.shape
    Sk = k_in.shape[1]

    def lin(x, w, b):
        return x @ w + b

    q = lin(q_in, p["W_q_w"], p["W_q_b"]).reshape(B, Sq, H, -1).transpose(0, 2, 1, 3)
    k = lin(k_in, p["W_k_w"], p["W_k_b"]).reshape(B, Sk, H, -1).transpose(0, 2, 1, 3)
    v = lin(v_in, p["W_v_w"], p["W_v_b"]).reshape(B, Sk, H, -1).transpose(0, 2, 1, 3)
    scores = jnp.einsum("bhqd,bhkd->bhqk", q, k) / jnp.sqrt(jnp.float32(key_dim))
    if mask is not None:
        scores = scores + (-1e9) * jnp.broadcast_to(
            jnp.asarray(mask, jnp.float32), scores.shape)
    w = jax.nn.softmax(scores, axis=1)  # torch implicit-dim softmax -> dim 1 (heads)
    o = jnp.einsum("bhqk,bhkd->bhqd", w, v)
    o = o.transpose(0, 2, 1, 3).reshape(B, Sq, key_dim)
    return lin(o, p["W_o_w"], p["W_o_b"])


# ---------------------------------------------------------------------------
# Parameter init (deterministic, PyTorch Linear-style uniform bounds).
# Weights are stored pre-transposed as (in, out) so the forward never pays
# for w.T; fused QKV weights are also precomputed once here.
# ---------------------------------------------------------------------------
def init_params(key, input_dim, num_head, key_dim, value_dim, output_dim):
    ks = jax.random.split(key, 8)

    def lin_init(kw, kb, fan_in, fan_out):
        bound = 1.0 / np.sqrt(fan_in)
        w = jax.random.uniform(kw, (fan_in, fan_out), jnp.float32, -bound, bound)
        b = jax.random.uniform(kb, (fan_out,), jnp.float32, -bound, bound)
        return w, b

    wq, bq = lin_init(ks[0], ks[1], input_dim, key_dim)
    wk, bk = lin_init(ks[2], ks[3], input_dim, key_dim)
    wv, bv = lin_init(ks[4], ks[5], input_dim, value_dim)
    wo, bo = lin_init(ks[6], ks[7], key_dim, output_dim)
    return dict(
        heads=num_head, key_dim=key_dim, value_dim=value_dim, output_dim=output_dim,
        W_q_w=wq, W_q_b=bq, W_k_w=wk, W_k_b=bk,
        W_v_w=wv, W_v_b=bv, W_o_w=wo, W_o_b=bo,
        W_qkv_w=jnp.concatenate([wq, wk, wv], axis=1),
        W_qkv_b=jnp.concatenate([bq, bk, bv], axis=0),
    )


if __name__ == "__main__":
    # Small shapes consistent with the module
    B, S = 2, 8
    input_dim, num_head, key_dim, value_dim, output_dim = 32, 4, 32, 32, 32
    assert value_dim == key_dim  # required by reshape_tensor(flag=False)

    root = jax.random.PRNGKey(0)
    k_par, k_q, k_k, k_v = jax.random.split(root, 4)
    params = init_params(k_par, input_dim, num_head, key_dim, value_dim, output_dim)

    queries = jax.random.normal(k_q, (B, S, input_dim), jnp.float32)
    keys = jax.random.normal(k_k, (B, S, input_dim), jnp.float32)
    values = jax.random.normal(k_v, (B, S, input_dim), jnp.float32)

    # 1) cross-attention inputs (distinct q/k/v), no mask
    out = jax.block_until_ready(multi_head_attention(params, queries, keys, values))
    ref = jax.block_until_ready(mha_reference(params, queries, keys, values))
    assert out.shape == (B, S, output_dim), out.shape
    np.testing.assert_allclose(np.asarray(out), np.asarray(ref), atol=2e-2, rtol=2e-2)

    # 2) self-attention (fused QKV path) with a causal mask (masked kernel variant)
    mask = jnp.triu(jnp.ones((S, S), jnp.float32), k=1)
    out2 = jax.block_until_ready(
        multi_head_attention(params, queries, queries, queries, mask=mask))
    ref2 = jax.block_until_ready(
        mha_reference(params, queries, queries, queries, mask=mask))
    np.testing.assert_allclose(np.asarray(out2), np.asarray(ref2), atol=2e-2, rtol=2e-2)

    print("KERNEL_OK")
</pallas_src>

<mosaic_0001>
module attributes {stable_mosaic.version = 11 : i64} {
  func.func @_linear_kernel(%arg0: i32, %arg1: memref<16x32xf32, #tpu.memory_space<vmem>>, %arg2: memref<32x32xf32, #tpu.memory_space<vmem>>, %arg3: memref<1x32xf32, #tpu.memory_space<vmem>>, %arg4: memref<16x32xf32, #tpu.memory_space<vmem>>) attributes {dimension_semantics = [#tpu.dimension_semantics<parallel>], iteration_bounds = array<i64: 1>, scalar_prefetch = 0 : i64, scratch_operands = 0 : i64, tpu.core_type = #tpu.core_type<tc>, window_params = [{transform_indices = @transform_0, window_bounds = array<i64: 16, 32>}, {pipeline_mode = #tpu.pipeline_mode<synchronous>, transform_indices = @transform_1, window_bounds = array<i64: 32, 32>}, {pipeline_mode = #tpu.pipeline_mode<synchronous>, transform_indices = @transform_2, window_bounds = array<i64: 1, 32>}, {transform_indices = @transform_3, window_bounds = array<i64: 16, 32>}]} {
    %c0 = arith.constant 0 : index
    %c0_0 = arith.constant 0 : index
    %0 = vector.load %arg1[%c0, %c0_0] : memref<16x32xf32, #tpu.memory_space<vmem>>, vector<16x32xf32>
    %c0_1 = arith.constant 0 : index
    %c0_2 = arith.constant 0 : index
    %1 = vector.load %arg2[%c0_1, %c0_2] : memref<32x32xf32, #tpu.memory_space<vmem>>, vector<32x32xf32>
    %cst = arith.constant dense<0.000000e+00> : vector<16x32xf32>
    %2 = tpu.matmul %0, %1, %cst {dimension_numbers = #tpu.dot_dimension_numbers<[1], [0], [0], [1], [0, 0, 1, 1], [], []>} : vector<16x32xf32>, vector<32x32xf32>, vector<16x32xf32> -> vector<16x32xf32>
    %c0_3 = arith.constant 0 : index
    %c0_4 = arith.constant 0 : index
    %3 = vector.load %arg3[%c0_3, %c0_4] : memref<1x32xf32, #tpu.memory_space<vmem>>, vector<1x32xf32>
    %4 = vector.broadcast %3 : vector<1x32xf32> to vector<16x32xf32>
    %5 = arith.addf %2, %4 : vector<16x32xf32>
    %c0_5 = arith.constant 0 : index
    %c0_6 = arith.constant 0 : index
    %6 = vector.load %arg4[%c0_5, %c0_6] : memref<16x32xf32, #tpu.memory_space<vmem>>, vector<16x32xf32>
    tpu.vector_store %arg4[%c0_5, %c0_6], %5 {strides = array<i32>} : memref<16x32xf32, #tpu.memory_space<vmem>>, vector<16x32xf32>,
    return
  }
  func.func @transform_0(%arg0: i32) -> (i32, i32) {
    %c0_i32 = arith.constant 0 : i32
    %c0_i32_0 = arith.constant 0 : i32
    return %arg0, %c0_i32 : i32, i32
  }
  func.func @transform_1(%arg0: i32) -> (i32, i32) {
    %c0_i32 = arith.constant 0 : i32
    %c0_i32_0 = arith.constant 0 : i32
    %c0_i32_1 = arith.constant 0 : i32
    return %c0_i32, %c0_i32_0 : i32, i32
  }
  func.func @transform_2(%arg0: i32) -> (i32, i32) {
    %c0_i32 = arith.constant 0 : i32
    %c0_i32_0 = arith.constant 0 : i32
    %c0_i32_1 = arith.constant 0 : i32
    return %c0_i32, %c0_i32_0 : i32, i32
  }
  func.func @transform_3(%arg0: i32) -> (i32, i32) {
    %c0_i32 = arith.constant 0 : i32
    %c0_i32_0 = arith.constant 0 : i32
    return %arg0, %c0_i32 : i32, i32
  }
}

</mosaic_0001>

<llo_original>
// kernel: tpu_custom_call.1
$region0: #{tpu_custom_call.1}
  #allocation0 [shape = 'u32[]', space=smem, size = 0x4, offset = 0x4, fixed_abs, tag = 'smem constant byte address 0x4 - core index']
  #allocation1 [shape = 'u32[144,128]{1,0:T(1,128)}', space=vmem, size = 0x12000, scoped, tag = 'internal scratch']
  %s0 = inlined_call_operand.hbm [shape: f32[16,32], index: 0, kind: input, shape index: {}]
  %s1 = inlined_call_operand.hbm [shape: f32[32,32], index: 1, kind: input, shape index: {}]
  %s2 = inlined_call_operand.vmem [shape: f32[1,32], index: 2, kind: input, shape index: {}]
  %s3 = inlined_call_operand.hbm [shape: f32[16,32], index: 3, kind: output, shape index: {}]
  %s4 = sld [smem:[#allocation0]]
  $region30: #{tpu_custom_call.1} parent=0
    _
  %s6 = ssub.s32 1, %s4
  %s7 = scalar_select 0, %s6, %s4
  $region1: #{tpu_custom_call.1} parent=0
    #allocation2 [shape = 'u8[8192]{0}', space=vmem, size = 0x2000, scoped, tag = 'input window, operand 0, single buffered']
    #allocation3 [shape = 's32[1]{0}', space=sflag, size = 0x4, scoped, tag = 'scoped memory for tpu_custom_call.1']
    #allocation4 [shape = 's32[1]{0}', space=sflag, size = 0x4, scoped, tag = 'scoped memory for tpu_custom_call.1']
    #allocation5 [shape = 'u8[16384]{0}', space=vmem, size = 0x4000, scoped, tag = 'input window, operand 1, single buffered']
    #allocation6 [shape = 's32[1]{0}', space=sflag, size = 0x4, scoped, tag = 'scoped memory for tpu_custom_call.1']
    #allocation7 [shape = 'u8[8192]{0}', space=vmem, size = 0x2000, scoped, tag = 'output window, operand 0, single buffered']
    %8 = vsyncpa [#allocation3], 0
    %9 = vsyncpa [#allocation6], 0
    %10 = vsyncpa [#allocation4], 0
    // Predicated region
    $region2: #{tpu_custom_call.1} parent=1 // pred_check
      _
    $region3: #{tpu_custom_call.1} parent=1 // pred_check_branch
      %12 = sbr.rel (0) target = $region5
    $region4: #{tpu_custom_call.1} parent=1 // pred_region
      %s14 = ssub.s32 256, 256
      %15 = vsyncadd [#allocation3], %s14
      %s16 = sshll.u32 [#allocation2], 4
      %s17 = int_to_ptr.vmem [resolvable:$true] %s16
      %22 = dma.hbm_to_vmem [thread:$0]  %s0, 256, %s17, [#allocation3], 128, 128, 8
    $region5: #{tpu_custom_call.1} parent=1 // pred_fallthru
      _
    // Predicated region
    $region6: #{tpu_custom_call.1} parent=1 // pred_check
      _
    $region7: #{tpu_custom_call.1} parent=1 // pred_check_branch
      %24 = sbr.rel (0) target = $region9
    $region8: #{tpu_custom_call.1} parent=1 // pred_region
      %s26 = ssub.s32 512, 512
      %27 = vsyncadd [#allocation6], %s26
      %s28 = sshll.u32 [#allocation5], 4
      %s29 = int_to_ptr.vmem [resolvable:$true] %s28
      %34 = dma.hbm_to_vmem [thread:$0]  %s1, 512, %s29, [#allocation6], 128, 128, 8
    $region9: #{tpu_custom_call.1} parent=1 // pred_fallthru
      _
    // Predicated region
    $region10: #{tpu_custom_call.1} parent=1 // pred_check
      _
    $region11: #{tpu_custom_call.1} parent=1 // pred_check_branch
      %36 = sbr.rel (0) target = $region13
    $region12: #{tpu_custom_call.1} parent=1 // pred_region
      _
    $region13: #{tpu_custom_call.1} parent=1 // pred_fallthru
      _
    // Predicated region
    $region14: #{tpu_custom_call.1} parent=1 // pred_check
      _
    $region15: #{tpu_custom_call.1} parent=1 // pred_check_branch
      %38 = sbr.rel (0) target = $region17
    $region16: #{tpu_custom_call.1} parent=1 // pred_region
      %39 = dma.done [#allocation3], 256
    $region17: #{tpu_custom_call.1} parent=1 // pred_fallthru
      _
    // Predicated region
    $region18: #{tpu_custom_call.1} parent=1 // pred_check
      _
    $region19: #{tpu_custom_call.1} parent=1 // pred_check_branch
      %41 = sbr.rel (0) target = $region21
    $region20: #{tpu_custom_call.1} parent=1 // pred_region
      %42 = dma.done [#allocation6], 512
    $region21: #{tpu_custom_call.1} parent=1 // pred_fallthru
      _
    %v43 = vld [vmem:[#allocation2] sm:$0xff]
    %v44 = vld [vmem:[#allocation2 + $0x8] sm:$0xff]
    %v45 = vld [vmem:[#allocation5] sm:$0xff]
    %v46 = vld [vmem:[#allocation5 + $0x8] sm:$0xff]
    %v47 = vld [vmem:[#allocation5 + $0x10] sm:$0xff]
    %v48 = vld [vmem:[#allocation5 + $0x18] sm:$0xff]
    %v49 = vld [vmem:[%s2] sm:$0x1]
    %v51 = vlaneseq
    %v52 = vshrl.u32 %v51, 7
    %v53 = vsub.s32 0, %v52
    %v54 = vrot.slane %v49, %v53
    %vm56 = vcmask 261120
    %v58 = vsel %vm56, %v43, 0
    %v61 = vsel %vm56, %v44, 0
    %63 = vmatprep.subr.mxu0 0.0
    %64 = vmatpush1.msra.mxu0 0.0
    %65 = vmatprep.subr.mxu0 0.0
    %66 = vmatpush1.msra.mxu0 0.0
    %67 = vmatprep.subr.mxu0 0.0
    %68 = vmatpush1.msra.mxu0 0.0
    %69 = vmatprep.subr.mxu0 0.0
    %70 = vmatpush1.msra.mxu0 0.0
    %71 = vmatprep.subr.mxu0 0.0
    %72 = vmatpush1.msra.mxu0 0.0
    %73 = vmatprep.subr.mxu0 0.0
    %74 = vmatpush1.msra.mxu0 0.0
    %75 = vmatprep.subr.mxu0 0.0
    %76 = vmatpush1.msra.mxu0 0.0
    %77 = vmatprep.subr.mxu0 0.0
    %78 = vmatpush1.msra.mxu0 0.0
    %79 = vmatprep.subr.mxu0 0.0
    %80 = vmatpush1.msra.mxu0 0.0
    %81 = vmatprep.subr.mxu0 0.0
    %82 = vmatpush1.msra.mxu0 0.0
    %83 = vmatprep.subr.mxu0 0.0
    %84 = vmatpush1.msra.mxu0 0.0
    %85 = vmatprep.subr.mxu0 0.0
    %86 = vmatpush1.msra.mxu0 0.0
    %87 = vmatprep.subr.mxu0 0.0
    %88 = vmatpush1.msra.mxu0 %v48
    %89 = vmatprep.subr.mxu0 0.0
    %90 = vmatpush1.msra.mxu0 %v47
    %91 = vmatprep.subr.mxu0 0.0
    %92 = vmatpush1.msra.mxu0 %v46
    %93 = vmatprep.subr.mxu0 0.0
    %94 = vmatpush1.msra.mxu0 %v45
    %95 = vmatprep.subr.mxu0 0.0
    %96 = vmatpush2.msra.mxu0 0.0
    %97 = vmatprep.subr.mxu0 0.0
    %98 = vmatpush2.msra.mxu0 0.0
    %99 = vmatprep.subr.mxu0 0.0
    %100 = vmatpush2.msra.mxu0 0.0
    %101 = vmatprep.subr.mxu0 0.0
    %102 = vmatpush2.msra.mxu0 0.0
    %103 = vmatprep.subr.mxu0 0.0
    %104 = vmatpush2.msra.mxu0 0.0
    %105 = vmatprep.subr.mxu0 0.0
    %106 = vmatpush2.msra.mxu0 0.0
    %107 = vmatprep.subr.mxu0 0.0
    %108 = vmatpush2.msra.mxu0 0.0
    %109 = vmatprep.subr.mxu0 0.0
    %110 = vmatpush2.msra.mxu0 0.0
    %111 = vmatprep.subr.mxu0 0.0
    %112 = vmatpush2.msra.mxu0 0.0
    %113 = vmatprep.subr.mxu0 0.0
    %114 = vmatpush2.msra.mxu0 0.0
    %115 = vmatprep.subr.mxu0 0.0
    %116 = vmatpush2.msra.mxu0 0.0
    %117 = vmatprep.subr.mxu0 0.0
    %118 = vmatpush2.msra.mxu0 0.0
    %119 = vmatprep.subr.mxu0 0.0
    %120 = vmatpush2.msra.mxu0 0.0
    %121 = vmatprep.subr.mxu0 0.0
    %122 = vmatpush2.msra.mxu0 0.0
    %123 = vmatprep.subr.mxu0 0.0
    %124 = vmatpush2.msra.mxu0 0.0
    %125 = vmatprep.subr.mxu0 0.0
    %126 = vmatpush2.msra.mxu0 0.0
    %127 = vmatprep.mubr.f32.mxu0 0.0
    %128 = vmatmul.mubr.f32.gmra.mxu0 %v58
    %v129 = vpop.f32.mrf.mxu0
    %v130 = vadd.f32 %v54, %v129
    %v131 = vpop.f32.mrf.mxu0
    %132 = vmatprep.mubr.f32.mxu0 0.0
    %133 = vmatmul.mubr.f32.gmra.mxu0 %v61
    %v134 = vpop.f32.mrf.mxu0
    %v135 = vadd.f32 %v54, %v134
    %v136 = vpop.f32.mrf.mxu0
    %137 = vdwg.mxu0
    %138 = vst.msk [vmem:[#allocation7] sm:$0xff] %vm56, %v130
    %139 = vst.msk [vmem:[#allocation7 + $0x8] sm:$0xff] %vm56, %v135
    // Predicated region
    $region22: #{tpu_custom_call.1} parent=1 // pred_check
      _
    $region23: #{tpu_custom_call.1} parent=1 // pred_check_branch
      %141 = sbr.rel (0) target = $region25
    $region24: #{tpu_custom_call.1} parent=1 // pred_region
      %s143 = ssub.s32 256, 256
      %144 = vsyncadd [#allocation4], %s143
      %s145 = sshll.u32 [#allocation7], 4
      %s146 = int_to_ptr.vmem [resolvable:$true] %s145
      %151 = dma.vmem_to_hbm [thread:$0]  %s146, 256, %s3, [#allocation4], 128, 128, 8
    $region25: #{tpu_custom_call.1} parent=1 // pred_fallthru
      _
    // Predicated region
    $region26: #{tpu_custom_call.1} parent=1 // pred_check
      _
    $region27: #{tpu_custom_call.1} parent=1 // pred_check_branch
      %153 = sbr.rel (0) target = $region29
    $region28: #{tpu_custom_call.1} parent=1 // pred_region
      %154 = dma.done [#allocation4], 256
    $region29: #{tpu_custom_call.1} parent=1 // pred_fallthru
      _
    %155 = vsyncpa [#allocation3], 1
    %156 = vsyncpa [#allocation6], 1
    %157 = vsyncpa [#allocation4], 1

</llo_original>
